<compile_context>
chip_gen: v7x
topology: tpu7x:2x2x1
jax: 0.10.0
libtpu: 0.0.40
codegen_flags: <defaults>
</compile_context>

<pallas_src>
import jax
import jax.numpy as jnp
from jax import lax
from jax.experimental import pallas as pl
from jax.experimental.pallas import tpu as pltpu

_LANE = 128


def _linear_head_kernel(x_ref, w_ref, b_ref, o_ref):
    # x_ref: (block_m, K)   activations (compute dtype, e.g. bf16)
    # w_ref: (N_pad, K)     weight, un-transposed, resident across grid steps
    # b_ref: (1, N_pad)     bias in f32
    # o_ref: (block_m, N_pad) lane-dense output tile
    acc = lax.dot_general(
        x_ref[...],
        w_ref[...],
        dimension_numbers=(((1,), (1,)), ((), ())),  # contract K with K (trans_b)
        preferred_element_type=jnp.float32,
    )
    o_ref[...] = (acc + b_ref[...]).astype(o_ref.dtype)


def _round_up(x, m):
    return (x + m - 1) // m * m


def linear_classifier_head(inputs, weight, bias, *, block_m=512,
                           compute_dtype=jnp.bfloat16):
    """inputs: (..., embedding_dim); weight: (output_dim, embedding_dim); bias: (output_dim,)."""
    *lead, emb = inputs.shape
    out_dim, emb_w = weight.shape
    assert emb == emb_w, "weight/embedding dim mismatch"
    out_dtype = inputs.dtype

    x2d = inputs.reshape(-1, emb)
    m = x2d.shape[0]

    # Sublane multiple for the compute dtype (bf16 packs 2 rows per sublane).
    sub = 16 if compute_dtype == jnp.bfloat16 else 8
    block_m = max(sub, min(block_m, _round_up(m, sub)))
    block_m = _round_up(block_m, sub)
    m_pad = _round_up(m, block_m)
    n_pad = _round_up(out_dim, _LANE)

    # Layout plumbing in plain JAX: pad rows of X, pad W/bias out to 128 lanes
    # (zero-filled so padded columns contribute nothing), cast to compute dtype.
    x_p = jnp.pad(x2d, ((0, m_pad - m), (0, 0))).astype(compute_dtype)
    w_p = jnp.pad(weight, ((0, n_pad - out_dim), (0, 0))).astype(compute_dtype)
    b_p = jnp.pad(bias, (0, n_pad - out_dim)).astype(jnp.float32).reshape(1, n_pad)

    grid_m = m_pad // block_m

    itemsize_out = jnp.dtype(out_dtype).itemsize
    cost = pl.CostEstimate(
        flops=2 * m_pad * emb * n_pad,
        transcendentals=0,
        bytes_accessed=(x_p.size * x_p.dtype.itemsize
                        + w_p.size * w_p.dtype.itemsize
                        + b_p.size * 4
                        + m_pad * n_pad * itemsize_out),
    )

    # TODO(synk): if embedding_dim grows very large (~8k+), add a second
    # "arbitrary" K grid axis with a VMEM f32 accumulator (pl.when init/finalize)
    # to keep per-step x blocks inside the v7x 64 MiB VMEM budget.
    out = pl.pallas_call(
        _linear_head_kernel,
        out_shape=jax.ShapeDtypeStruct((m_pad, n_pad), out_dtype),
        grid_spec=pltpu.PrefetchScalarGridSpec(
            num_scalar_prefetch=0,
            grid=(grid_m,),
            in_specs=[
                pl.BlockSpec((block_m, emb), lambda i: (i, 0)),   # X: streamed over M
                pl.BlockSpec((n_pad, emb), lambda i: (0, 0)),     # W: resident
                pl.BlockSpec((1, n_pad), lambda i: (0, 0)),       # bias: resident
            ],
            out_specs=pl.BlockSpec((block_m, n_pad), lambda i: (i, 0)),
        ),
        compiler_params=pltpu.CompilerParams(
            dimension_semantics=("parallel",),  # lets v7x shard M across both TCs
        ),
        cost_estimate=cost,
    )(x_p, w_p, b_p)

    out = out[:m, :out_dim]
    return out.reshape(*lead, out_dim)


def init_params(key, embedding_dim, output_dim=2):
    # xavier_normal_: std = sqrt(2 / (fan_in + fan_out)); bias filled with 0.
    std = (2.0 / (embedding_dim + output_dim)) ** 0.5
    w = std * jax.random.normal(key, (output_dim, embedding_dim), dtype=jnp.float32)
    b = jnp.zeros((output_dim,), dtype=jnp.float32)
    return w, b


if __name__ == "__main__":
    batch, seq, embedding_dim, output_dim = 2, 8, 32, 2

    key = jax.random.PRNGKey(0)
    k_x, k_w = jax.random.split(key)

    x = jax.random.normal(k_x, (batch, seq, embedding_dim), dtype=jnp.float32)
    weight, bias = init_params(k_w, embedding_dim, output_dim)

    out = linear_classifier_head(x, weight, bias)
    out = jax.block_until_ready(out)
    assert out.shape == (batch, seq, output_dim)

    # Tight check against a reference computed at the same (bf16 input) precision
    # with f32 accumulation, matching the kernel's numerics exactly up to sum order.
    x_c = x.astype(jnp.bfloat16).astype(jnp.float32)
    w_c = weight.astype(jnp.bfloat16).astype(jnp.float32)
    ref_bf16 = x_c @ w_c.T + bias
    assert jnp.allclose(out, ref_bf16, atol=1e-4, rtol=1e-4)

    # Loose check against the full-f32 nn.Linear semantics (bf16 cast error only).
    ref_f32 = x @ weight.T + bias
    assert jnp.allclose(out, ref_f32, atol=1e-1, rtol=1e-1)

    print("KERNEL_OK")
</pallas_src>

<mosaic_0001>
module attributes {stable_mosaic.version = 11 : i64} {
  func.func @_linear_head_kernel(%arg0: i32, %arg1: memref<16x32xbf16, #tpu.memory_space<vmem>>, %arg2: memref<128x32xbf16, #tpu.memory_space<vmem>>, %arg3: memref<1x128xf32, #tpu.memory_space<vmem>>, %arg4: memref<16x128xf32, #tpu.memory_space<vmem>>) attributes {dimension_semantics = [#tpu.dimension_semantics<parallel>], iteration_bounds = array<i64: 1>, scalar_prefetch = 0 : i64, scratch_operands = 0 : i64, tpu.core_type = #tpu.core_type<tc>, window_params = [{transform_indices = @transform_0, window_bounds = array<i64: 16, 32>}, {pipeline_mode = #tpu.pipeline_mode<synchronous>, transform_indices = @transform_1, window_bounds = array<i64: 128, 32>}, {pipeline_mode = #tpu.pipeline_mode<synchronous>, transform_indices = @transform_2, window_bounds = array<i64: 1, 128>}, {transform_indices = @transform_3, window_bounds = array<i64: 16, 128>}]} {
    %c0 = arith.constant 0 : index
    %c0_0 = arith.constant 0 : index
    %0 = vector.load %arg1[%c0, %c0_0] : memref<16x32xbf16, #tpu.memory_space<vmem>>, vector<16x32xbf16>
    %c0_1 = arith.constant 0 : index
    %c0_2 = arith.constant 0 : index
    %1 = vector.load %arg2[%c0_1, %c0_2] : memref<128x32xbf16, #tpu.memory_space<vmem>>, vector<128x32xbf16>
    %cst = arith.constant dense<0.000000e+00> : vector<16x128xf32>
    %2 = tpu.matmul %0, %1, %cst {dimension_numbers = #tpu.dot_dimension_numbers<[1], [1], [0], [0], [0, 0, 1, 0], [], []>} : vector<16x32xbf16>, vector<128x32xbf16>, vector<16x128xf32> -> vector<16x128xf32>
    %c0_3 = arith.constant 0 : index
    %c0_4 = arith.constant 0 : index
    %3 = vector.load %arg3[%c0_3, %c0_4] : memref<1x128xf32, #tpu.memory_space<vmem>>, vector<1x128xf32>
    %4 = vector.broadcast %3 : vector<1x128xf32> to vector<16x128xf32>
    %5 = arith.addf %2, %4 : vector<16x128xf32>
    %c0_5 = arith.constant 0 : index
    %c0_6 = arith.constant 0 : index
    %6 = vector.load %arg4[%c0_5, %c0_6] : memref<16x128xf32, #tpu.memory_space<vmem>>, vector<16x128xf32>
    tpu.vector_store %arg4[%c0_5, %c0_6], %5 {strides = array<i32>} : memref<16x128xf32, #tpu.memory_space<vmem>>, vector<16x128xf32>,
    return
  }
  func.func @transform_0(%arg0: i32) -> (i32, i32) {
    %c0_i32 = arith.constant 0 : i32
    %c0_i32_0 = arith.constant 0 : i32
    return %arg0, %c0_i32 : i32, i32
  }
  func.func @transform_1(%arg0: i32) -> (i32, i32) {
    %c0_i32 = arith.constant 0 : i32
    %c0_i32_0 = arith.constant 0 : i32
    %c0_i32_1 = arith.constant 0 : i32
    return %c0_i32, %c0_i32_0 : i32, i32
  }
  func.func @transform_2(%arg0: i32) -> (i32, i32) {
    %c0_i32 = arith.constant 0 : i32
    %c0_i32_0 = arith.constant 0 : i32
    %c0_i32_1 = arith.constant 0 : i32
    return %c0_i32, %c0_i32_0 : i32, i32
  }
  func.func @transform_3(%arg0: i32) -> (i32, i32) {
    %c0_i32 = arith.constant 0 : i32
    %c0_i32_0 = arith.constant 0 : i32
    return %arg0, %c0_i32 : i32, i32
  }
}

</mosaic_0001>

<llo_original>
// kernel: tpu_custom_call.1
$region0: #{tpu_custom_call.1}
  #allocation0 [shape = 'u32[]', space=smem, size = 0x4, offset = 0x4, fixed_abs, tag = 'smem constant byte address 0x4 - core index']
  #allocation1 [shape = 'u32[144,128]{1,0:T(1,128)}', space=vmem, size = 0x12000, scoped, tag = 'internal scratch']
  %s0 = inlined_call_operand.vmem [shape: bf16[16,32], index: 0, kind: input, shape index: {}]
  %s1 = inlined_call_operand.vmem [shape: bf16[128,32], index: 1, kind: input, shape index: {}]
  %s2 = inlined_call_operand.vmem [shape: f32[1,128], index: 2, kind: input, shape index: {}]
  %s3 = inlined_call_operand.hbm [shape: f32[16,128], index: 3, kind: output, shape index: {}]
  %s4 = sld [smem:[#allocation0]]
  $region22: #{tpu_custom_call.1} parent=0
    _
  %s6 = ssub.s32 1, %s4
  %s7 = scalar_select 0, %s6, %s4
  $region1: #{tpu_custom_call.1} parent=0
    #allocation2 [shape = 'u8[8192]{0}', space=vmem, size = 0x2000, scoped, tag = 'output window, operand 0, single buffered']
    #allocation3 [shape = 's32[1]{0}', space=sflag, size = 0x4, scoped, tag = 'scoped memory for tpu_custom_call.1']
    %8 = vsyncpa [#allocation3], 0
    // Predicated region
    $region2: #{tpu_custom_call.1} parent=1 // pred_check
      _
    $region3: #{tpu_custom_call.1} parent=1 // pred_check_branch
      %10 = sbr.rel (0) target = $region5
    $region4: #{tpu_custom_call.1} parent=1 // pred_region
      _
    $region5: #{tpu_custom_call.1} parent=1 // pred_fallthru
      _
    // Predicated region
    $region6: #{tpu_custom_call.1} parent=1 // pred_check
      _
    $region7: #{tpu_custom_call.1} parent=1 // pred_check_branch
      %12 = sbr.rel (0) target = $region9
    $region8: #{tpu_custom_call.1} parent=1 // pred_region
      _
    $region9: #{tpu_custom_call.1} parent=1 // pred_fallthru
      _
    // Predicated region
    $region10: #{tpu_custom_call.1} parent=1 // pred_check
      _
    $region11: #{tpu_custom_call.1} parent=1 // pred_check_branch
      %14 = sbr.rel (0) target = $region13
    $region12: #{tpu_custom_call.1} parent=1 // pred_region
      _
    $region13: #{tpu_custom_call.1} parent=1 // pred_fallthru
      _
    %v16 = vld [vmem:[%s0] sm:$0xf]
    %v17 = vld [vmem:[%s0 + $0x4] sm:$0xf]
    %v18 = vld [vmem:[%s1] sm:$0xf]
    %v19 = vld [vmem:[%s1 + $0x4] sm:$0xf]
    %v20 = vld [vmem:[%s1 + $0x8] sm:$0xf]
    %v21 = vld [vmem:[%s1 + $0xc] sm:$0xf]
    %v22 = vld [vmem:[%s1 + $0x10] sm:$0xf]
    %v23 = vld [vmem:[%s1 + $0x14] sm:$0xf]
    %v24 = vld [vmem:[%s1 + $0x18] sm:$0xf]
    %v25 = vld [vmem:[%s1 + $0x1c] sm:$0xf]
    %v26 = vld [vmem:[%s1 + $0x20] sm:$0xf]
    %v27 = vld [vmem:[%s1 + $0x24] sm:$0xf]
    %v28 = vld [vmem:[%s1 + $0x28] sm:$0xf]
    %v29 = vld [vmem:[%s1 + $0x2c] sm:$0xf]
    %v30 = vld [vmem:[%s1 + $0x30] sm:$0xf]
    %v31 = vld [vmem:[%s1 + $0x34] sm:$0xf]
    %v32 = vld [vmem:[%s1 + $0x38] sm:$0xf]
    %v33 = vld [vmem:[%s1 + $0x3c] sm:$0xf]
    %v34 = vld [vmem:[%s2] sm:$0x1]
    %v36 = vlaneseq
    %v37 = vshrl.u32 %v36, 7
    %v38 = vsub.s32 0, %v37
    %v39 = vrot.slane %v34, %v38
    %v43 = vunpack.c.l.b16 %v16
    %v44 = vunpack.c.l.b16 %v17
    %v45 = vpack.c.b16 %v44, %v43
    %v62 = vunpack.c.l.b16 %v18
    %v63 = vunpack.c.l.b16 %v19
    %v64 = vunpack.c.l.b16 %v20
    %v65 = vunpack.c.l.b16 %v21
    %v66 = vunpack.c.l.b16 %v22
    %v67 = vunpack.c.l.b16 %v23
    %v68 = vunpack.c.l.b16 %v24
    %v69 = vunpack.c.l.b16 %v25
    %v70 = vunpack.c.l.b16 %v26
    %v71 = vunpack.c.l.b16 %v27
    %v72 = vunpack.c.l.b16 %v28
    %v73 = vunpack.c.l.b16 %v29
    %v74 = vunpack.c.l.b16 %v30
    %v75 = vunpack.c.l.b16 %v31
    %v76 = vunpack.c.l.b16 %v32
    %v77 = vunpack.c.l.b16 %v33
    %v78 = vpack.c.b16 %v63, %v62
    %v79 = vpack.c.b16 %v65, %v64
    %v80 = vpack.c.b16 %v67, %v66
    %v81 = vpack.c.b16 %v69, %v68
    %v82 = vpack.c.b16 %v71, %v70
    %v83 = vpack.c.b16 %v73, %v72
    %v84 = vpack.c.b16 %v75, %v74
    %v85 = vpack.c.b16 %v77, %v76
    %vm86 = vcmask 261120
    %v88 = vsel %vm86, %v45, 0
    %v91 = vsel %vm86, %v78, 0
    %v94 = vsel %vm86, %v79, 0
    %v97 = vsel %vm86, %v80, 0
    %v100 = vsel %vm86, %v81, 0
    %v103 = vsel %vm86, %v82, 0
    %v106 = vsel %vm86, %v83, 0
    %v109 = vsel %vm86, %v84, 0
    %v112 = vsel %vm86, %v85, 0
    %114 = vmatprep.subr.bf16.mxu0 0
    %115 = vmatpush1.bf16.xpose.msra.mxu0 %v91
    %116 = vmatprep.subr.bf16.mxu0 0
    %117 = vmatpush1.bf16.xpose.msra.mxu0 %v94
    %118 = vmatprep.subr.bf16.mxu0 0
    %119 = vmatpush1.bf16.xpose.msra.mxu0 %v97
    %120 = vmatprep.subr.bf16.mxu0 0
    %121 = vmatpush1.bf16.xpose.msra.mxu0 %v100
    %122 = vmatprep.subr.bf16.mxu0 0
    %123 = vmatpush1.bf16.xpose.msra.mxu0 %v103
    %124 = vmatprep.subr.bf16.mxu0 0
    %125 = vmatpush1.bf16.xpose.msra.mxu0 %v106
    %126 = vmatprep.subr.bf16.mxu0 0
    %127 = vmatpush1.bf16.xpose.msra.mxu0 %v109
    %128 = vmatprep.subr.bf16.mxu0 0
    %129 = vmatpush1.bf16.xpose.msra.mxu0 %v112
    %130 = vmatprep.subr.bf16.mxu0 0
    %131 = vmatpush1.bf16.xpose.msra.mxu0 0
    %132 = vmatprep.subr.bf16.mxu0 0
    %133 = vmatpush1.bf16.xpose.msra.mxu0 0
    %134 = vmatprep.subr.bf16.mxu0 0
    %135 = vmatpush1.bf16.xpose.msra.mxu0 0
    %136 = vmatprep.subr.bf16.mxu0 0
    %137 = vmatpush1.bf16.xpose.msra.mxu0 0
    %138 = vmatprep.subr.bf16.mxu0 0
    %139 = vmatpush1.bf16.xpose.msra.mxu0 0
    %140 = vmatprep.subr.bf16.mxu0 0
    %141 = vmatpush1.bf16.xpose.msra.mxu0 0
    %142 = vmatprep.subr.bf16.mxu0 0
    %143 = vmatpush1.bf16.xpose.msra.mxu0 0
    %144 = vmatprep.subr.bf16.mxu0 0
    %145 = vmatpush1.bf16.xpose.msra.mxu0 0
    %146 = vmatprep.mubr.bf16.mxu0 0
    %147 = vmatmul.mubr.bf16.gmra.mrb[0].mxu0 %v88
    %v148 = vpop.f32.mrb[0].mxu0
    %v149 = vadd.f32 %v39, %v148
    %v150 = vpop.f32.mrb[0].mxu0
    %v151 = vpop.f32.mrb[0].mxu0
    %v152 = vadd.f32 %v39, %v151
    %v153 = vpop.f32.mrb[0].mxu0
    %154 = vdwg.mxu0
    %155 = vst [vmem:[#allocation2] sm:$0xff] %v149
    %156 = vst [vmem:[#allocation2 + $0x8] sm:$0xff] %v152
    // Predicated region
    $region14: #{tpu_custom_call.1} parent=1 // pred_check
      _
    $region15: #{tpu_custom_call.1} parent=1 // pred_check_branch
      %158 = sbr.rel (0) target = $region17
    $region16: #{tpu_custom_call.1} parent=1 // pred_region
      %s160 = ssub.s32 256, 256
      %161 = vsyncadd [#allocation3], %s160
      %s162 = sshll.u32 [#allocation2], 4
      %s163 = int_to_ptr.vmem [resolvable:$true] %s162
      %168 = dma.vmem_to_hbm [thread:$0]  %s163, 256, %s3, [#allocation3], 128, 128, 8
    $region17: #{tpu_custom_call.1} parent=1 // pred_fallthru
      _
    // Predicated region
    $region18: #{tpu_custom_call.1} parent=1 // pred_check
      _
    $region19: #{tpu_custom_call.1} parent=1 // pred_check_branch
      %170 = sbr.rel (0) target = $region21
    $region20: #{tpu_custom_call.1} parent=1 // pred_region
      %171 = dma.done [#allocation3], 256
    $region21: #{tpu_custom_call.1} parent=1 // pred_fallthru
      _
    %172 = vsyncpa [#allocation3], 1

</llo_original>
